<compile_context>
chip_gen: v5e
topology: v5e:2x2
jax: 0.10.0
libtpu: 0.0.40
codegen_flags: <defaults>
</compile_context>

<pallas_src>
import functools

import jax
import jax.numpy as jnp
from jax import lax
from jax.experimental import pallas as pl
from jax.experimental.pallas import tpu as pltpu


# ----------------------------- Pallas kernel ------------------------------ #
def _conv1x1_bn_relu_kernel(x_ref, w_ref, t_ref, o_ref, *, dot_dtype):
    # x_ref: (C, TM)  f32  -- channels x pixels (flattened NCHW slab, one image)
    # w_ref: (C, C)   f32  -- BN-scale-folded conv weight (C_out, C_in)
    # t_ref: (C, 1)   f32  -- folded shift = beta - mean*scale + conv_bias*scale
    # o_ref: (C, TM)  out_dtype (bf16 by default) -- lane-dense output tile
    x = x_ref[...].astype(dot_dtype)          # no-op when dot_dtype == f32
    w = w_ref[...].astype(dot_dtype)
    y = jnp.dot(w, x, preferred_element_type=jnp.float32)   # f32 accumulate
    o_ref[...] = jnp.maximum(y + t_ref[...], 0.0).astype(o_ref.dtype)


def _round_up(v, m):
    return ((v + m - 1) // m) * m


def _vmem_and_tile(hw, c, n, *, in_itemsize, out_itemsize, max_tm=8192):
    """Pick (pixel-tile width, #tiles, vmem_limit_bytes), generation-aware."""
    try:
        vmem_cap = int(pltpu.get_tpu_info().vmem_capacity_bytes)
    except Exception:
        vmem_cap = 64 << 20                      # conservative (v7x per-TC VMEM)
    vmem_limit = min((vmem_cap * 3) // 4, 100 << 20)   # ~48 MiB v7x / ~96 MiB v5e,v6e

    # Sublane packing: f32 -> 8, bf16 -> 16 rows per vreg tile.
    c_in = _round_up(c, 32 // in_itemsize)
    c_out = _round_up(c, 32 // out_itemsize)
    c_lane = _round_up(c, 128)

    # Resident, double-buffered fixed tiles: weight (C, C) f32 + shift (C, 1) f32.
    fixed = 2 * (c_in * c_lane * 4 + c_in * 128 * 4)
    budget = max((vmem_limit - fixed) // 2, 1 << 20)   # headroom for Mosaic scratch

    # Double-buffered x tile (f32) + out tile (out_dtype), per pixel column.
    per_pixel = 2 * (c_in * in_itemsize + c_out * out_itemsize)
    tm = budget // per_pixel
    tm = max(128, min(max_tm, (tm // 128) * 128))

    if hw <= tm:
        # Single tile spans the whole pixel axis (block dim == array dim: always legal,
        # even when hw is not a multiple of 128).
        tm_eff, n_tiles = hw, 1
        # v7x has 2 TensorCores: keep >= 2 steps on a parallel axis when possible.
        if n == 1 and hw >= 256:
            tm_eff = _round_up(pl.cdiv(hw, 2), 128)
            n_tiles = pl.cdiv(hw, tm_eff)
    else:
        tm_eff = tm
        n_tiles = pl.cdiv(hw, tm_eff)            # partial last tile: masked writes
    return tm_eff, n_tiles, vmem_limit


def _conv1x1_bn_relu(x_ncm, w_scaled, shift, *, tm, n_tiles, vmem_limit,
                     dot_dtype, out_dtype):
    """x_ncm: (N, C, M) f32.  Returns (N, C, M) out_dtype."""
    N, C, M = x_ncm.shape
    flops = 2 * N * M * C * C
    bytes_accessed = (N * M * C * x_ncm.dtype.itemsize
                      + N * M * C * jnp.dtype(out_dtype).itemsize
                      + C * C * 4 + C * 4)
    kernel = functools.partial(_conv1x1_bn_relu_kernel, dot_dtype=dot_dtype)
    return pl.pallas_call(
        kernel,
        out_shape=jax.ShapeDtypeStruct((N, C, M), out_dtype),
        grid_spec=pltpu.PrefetchScalarGridSpec(
            num_scalar_prefetch=0,
            grid=(N, n_tiles),
            in_specs=[
                pl.BlockSpec((None, C, tm), lambda n, i: (n, 0, i)),
                pl.BlockSpec((C, C), lambda n, i: (0, 0)),
                pl.BlockSpec((C, 1), lambda n, i: (0, 0)),
            ],
            out_specs=pl.BlockSpec((None, C, tm), lambda n, i: (n, 0, i)),
        ),
        compiler_params=pltpu.CompilerParams(
            dimension_semantics=("parallel", "parallel"),
            vmem_limit_bytes=int(vmem_limit),
        ),
        cost_estimate=pl.CostEstimate(
            flops=int(flops), transcendentals=0, bytes_accessed=int(bytes_accessed)),
    )(x_ncm, w_scaled, shift)


# ------------------------------ Module glue ------------------------------- #
def init_sample_params(key, feature):
    """Deterministic parameter init matching nn.Conv2d(f, f, 1) + BatchNorm2d(f)."""
    k1, k2, k3, k4, k5, k6 = jax.random.split(key, 6)
    fan_in = feature                      # 1x1 conv: fan_in = C_in * 1 * 1
    bound = 1.0 / jnp.sqrt(fan_in)
    return {
        # conv weight logical shape (C_out, C_in, 1, 1) -> stored as (C_out, C_in)
        "conv_w": jax.random.uniform(k1, (feature, feature), jnp.float32, -bound, bound),
        "conv_b": jax.random.uniform(k2, (feature,), jnp.float32, -bound, bound),
        "bn_gamma": 1.0 + 0.1 * jax.random.normal(k3, (feature,), jnp.float32),
        "bn_beta": 0.1 * jax.random.normal(k4, (feature,), jnp.float32),
        # eval-mode (running) BatchNorm statistics
        "bn_mean": 0.1 * jax.random.normal(k5, (feature,), jnp.float32),
        "bn_var": jnp.abs(1.0 + 0.1 * jax.random.normal(k6, (feature,), jnp.float32)),
        "bn_eps": jnp.float32(1e-5),
    }


def _fold_bn_into_conv(params):
    """Fold eval-mode BN (+ conv bias) into a scaled weight and a shift (all f32)."""
    inv_std = lax.rsqrt(params["bn_var"] + params["bn_eps"])
    scale = params["bn_gamma"] * inv_std                                  # (C,)
    w_scaled = (params["conv_w"] * scale[:, None]).astype(jnp.float32)    # (C_out, C_in)
    shift = (params["bn_beta"] - params["bn_mean"] * scale
             + params["conv_b"] * scale).astype(jnp.float32)              # (C,)
    return w_scaled, shift


@functools.partial(jax.jit, static_argnames=("sec", "out_dtype"))
def sample_forward(x_nchw, params, sec="up", out_dtype=jnp.bfloat16):
    """Forward pass of Sample. x_nchw: (N, C, H, W) float32."""
    assert sec in ("up", "down")

    if sec == "down":
        # TODO(synk): reference F.max_pool2d(x) has no kernel_size (would raise in
        # PyTorch); assume the intended 2x2 / stride-2 max pool.
        x_nchw = lax.reduce_window(
            x_nchw, -jnp.inf, lax.max,
            window_dimensions=(1, 1, 2, 2),
            window_strides=(1, 1, 2, 2),
            padding="VALID",
        )

    N, C, H, W = x_nchw.shape
    w_scaled, shift = _fold_bn_into_conv(params)

    hw = H * W
    tm, n_tiles, vmem_limit = _vmem_and_tile(
        hw, C, N,
        in_itemsize=x_nchw.dtype.itemsize,
        out_itemsize=jnp.dtype(out_dtype).itemsize)

    # HBM-bound: keep f32 math for small/moderate C (no quantization error);
    # only cast to bf16 in-kernel (free VPU work) when C is large enough that
    # MXU throughput could matter.
    dot_dtype = jnp.float32 if C < 256 else jnp.bfloat16

    # Flattened NCHW is already the lane-dense (N, C, M) layout the kernel wants:
    # no transposes, no cast pass, no pad pass.
    x_flat = x_nchw.reshape(N, C, hw)

    y = _conv1x1_bn_relu(x_flat, w_scaled, shift.reshape(C, 1),
                         tm=tm, n_tiles=n_tiles, vmem_limit=vmem_limit,
                         dot_dtype=dot_dtype, out_dtype=out_dtype)
    y = y.reshape(N, C, H, W)

    if sec == "up":
        # Nearest-neighbor 2x upsample commutes with 1x1 conv / per-channel BN /
        # ReLU, so it is applied AFTER the fused kernel (4x less kernel work,
        # and the upsample reads the halved-width bf16 output).
        y = jnp.repeat(jnp.repeat(y, 2, axis=2), 2, axis=3)
    return y


# -------------------------------- main ------------------------------------ #
if __name__ == "__main__":
    key = jax.random.PRNGKey(0)
    k_x, k_p = jax.random.split(key)

    N, C, H, W = 2, 4, 16, 16
    x = jax.random.normal(k_x, (N, C, H, W), dtype=jnp.float32)
    params = init_sample_params(k_p, C)

    def f32_ref(x_in):
        # Pure-f32 reference with PyTorch semantics: conv -> BN(eval) -> ReLU.
        y = jnp.einsum("nchw,oc->nohw", x_in, params["conv_w"])
        y = y + params["conv_b"][None, :, None, None]
        inv_std = 1.0 / jnp.sqrt(params["bn_var"] + params["bn_eps"])
        y = (y - params["bn_mean"][None, :, None, None]) \
            * (params["bn_gamma"] * inv_std)[None, :, None, None]
        y = y + params["bn_beta"][None, :, None, None]
        return jnp.maximum(y, 0.0)

    # --- sec='up' (default bf16 output): (N, C, 2H, 2W) ---------------------
    out_up = jax.block_until_ready(sample_forward(x, params, sec="up"))
    assert out_up.shape == (N, C, 2 * H, 2 * W), out_up.shape
    assert out_up.dtype == jnp.dtype(jnp.bfloat16), out_up.dtype
    assert bool(jnp.all(out_up.astype(jnp.float32) >= 0.0))      # ReLU

    x_up = jnp.repeat(jnp.repeat(x, 2, axis=2), 2, axis=3)
    ref_up = f32_ref(x_up)
    # Tolerance sized for the bf16 output quantization only (math is f32).
    assert bool(jnp.allclose(out_up.astype(jnp.float32), ref_up,
                             atol=3e-2, rtol=2e-2)), \
        float(jnp.max(jnp.abs(out_up.astype(jnp.float32) - ref_up)))

    # --- sec='down' (default bf16 output): (N, C, H/2, W/2) ------------------
    out_dn = jax.block_until_ready(sample_forward(x, params, sec="down"))
    assert out_dn.shape == (N, C, H // 2, W // 2), out_dn.shape
    assert bool(jnp.all(out_dn.astype(jnp.float32) >= 0.0))

    x_dn = lax.reduce_window(x, -jnp.inf, lax.max,
                             (1, 1, 2, 2), (1, 1, 2, 2), "VALID")
    ref_dn = f32_ref(x_dn)
    assert bool(jnp.allclose(out_dn.astype(jnp.float32), ref_dn,
                             atol=3e-2, rtol=2e-2)), \
        float(jnp.max(jnp.abs(out_dn.astype(jnp.float32) - ref_dn)))

    # --- full-f32 fidelity path (out_dtype=f32, f32 dot): near-exact ---------
    out_up32 = jax.block_until_ready(
        sample_forward(x, params, sec="up", out_dtype=jnp.float32))
    assert out_up32.dtype == jnp.dtype(jnp.float32)
    assert bool(jnp.allclose(out_up32, ref_up, atol=1e-4, rtol=1e-4)), \
        float(jnp.max(jnp.abs(out_up32 - ref_up)))

    print("KERNEL_OK")
</pallas_src>

<mosaic_0001>
module attributes {stable_mosaic.version = 11 : i64} {
  func.func @_conv1x1_bn_relu_kernel(%arg0: i32, %arg1: i32, %arg2: memref<1x4x256xf32, #tpu.memory_space<vmem>>, %arg3: memref<4x4xf32, #tpu.memory_space<vmem>>, %arg4: memref<4x1xf32, #tpu.memory_space<vmem>>, %arg5: memref<1x4x256xbf16, #tpu.memory_space<vmem>>) attributes {dimension_semantics = [#tpu.dimension_semantics<parallel>, #tpu.dimension_semantics<parallel>], iteration_bounds = array<i64: 2, 1>, scalar_prefetch = 0 : i64, scratch_operands = 0 : i64, tpu.core_type = #tpu.core_type<tc>, window_params = [{transform_indices = @transform_0, window_bounds = array<i64: 1, 4, 256>}, {pipeline_mode = #tpu.pipeline_mode<synchronous>, transform_indices = @transform_1, window_bounds = array<i64: 4, 4>}, {pipeline_mode = #tpu.pipeline_mode<synchronous>, transform_indices = @transform_2, window_bounds = array<i64: 4, 1>}, {transform_indices = @transform_3, window_bounds = array<i64: 1, 4, 256>}]} {
    %c0 = arith.constant 0 : index
    %c0_0 = arith.constant 0 : index
    %c0_1 = arith.constant 0 : index
    %0 = vector.load %arg2[%c0, %c0_0, %c0_1] : memref<1x4x256xf32, #tpu.memory_space<vmem>>, vector<1x4x256xf32>
    %1 = vector.shape_cast %0 : vector<1x4x256xf32> to vector<4x256xf32>
    %c0_2 = arith.constant 0 : index
    %c0_3 = arith.constant 0 : index
    %2 = vector.load %arg3[%c0_2, %c0_3] : memref<4x4xf32, #tpu.memory_space<vmem>>, vector<4x4xf32>
    %cst = arith.constant dense<0.000000e+00> : vector<4x256xf32>
    %3 = tpu.matmul %2, %1, %cst {dimension_numbers = #tpu.dot_dimension_numbers<[1], [0], [0], [1], [0, 0, 1, 1], [], []>} : vector<4x4xf32>, vector<4x256xf32>, vector<4x256xf32> -> vector<4x256xf32>
    %c0_4 = arith.constant 0 : index
    %c0_5 = arith.constant 0 : index
    %4 = vector.load %arg4[%c0_4, %c0_5] : memref<4x1xf32, #tpu.memory_space<vmem>>, vector<4x1xf32>
    %5 = vector.broadcast %4 : vector<4x1xf32> to vector<4x256xf32>
    %6 = arith.addf %3, %5 : vector<4x256xf32>
    %cst_6 = arith.constant 0.000000e+00 : f32
    %7 = vector.broadcast %cst_6 : f32 to vector<4x256xf32>
    %8 = arith.maximumf %6, %7 : vector<4x256xf32>
    %9 = arith.truncf %8 : vector<4x256xf32> to vector<4x256xbf16>
    %c0_7 = arith.constant 0 : index
    %c0_8 = arith.constant 0 : index
    %c0_9 = arith.constant 0 : index
    %10 = vector.load %arg5[%c0_7, %c0_8, %c0_9] : memref<1x4x256xbf16, #tpu.memory_space<vmem>>, vector<1x4x256xbf16>
    %11 = vector.shape_cast %10 : vector<1x4x256xbf16> to vector<4x256xbf16>
    %12 = vector.shape_cast %9 : vector<4x256xbf16> to vector<1x4x256xbf16>
    tpu.vector_store %arg5[%c0_7, %c0_8, %c0_9], %12 {strides = array<i32>} : memref<1x4x256xbf16, #tpu.memory_space<vmem>>, vector<1x4x256xbf16>,
    return
  }
  func.func @transform_0(%arg0: i32, %arg1: i32) -> (i32, i32, i32) {
    %c0_i32 = arith.constant 0 : i32
    %c0_i32_0 = arith.constant 0 : i32
    return %arg0, %c0_i32, %arg1 : i32, i32, i32
  }
  func.func @transform_1(%arg0: i32, %arg1: i32) -> (i32, i32) {
    %c0_i32 = arith.constant 0 : i32
    %c0_i32_0 = arith.constant 0 : i32
    %c0_i32_1 = arith.constant 0 : i32
    return %c0_i32, %c0_i32_0 : i32, i32
  }
  func.func @transform_2(%arg0: i32, %arg1: i32) -> (i32, i32) {
    %c0_i32 = arith.constant 0 : i32
    %c0_i32_0 = arith.constant 0 : i32
    %c0_i32_1 = arith.constant 0 : i32
    return %c0_i32, %c0_i32_0 : i32, i32
  }
  func.func @transform_3(%arg0: i32, %arg1: i32) -> (i32, i32, i32) {
    %c0_i32 = arith.constant 0 : i32
    %c0_i32_0 = arith.constant 0 : i32
    return %arg0, %c0_i32, %arg1 : i32, i32, i32
  }
}

</mosaic_0001>

<llo_original>
// kernel: sample_forward.1
$region0: #{sample_forward.1}
  #allocation0 [shape = 'u32[]', space=smem, size = 0x4, offset = 0x4, fixed_abs, tag = 'smem constant byte address 0x4 - core index']
  #allocation1 [shape = 'u32[72,128]{1,0:T(1,128)}', space=vmem, size = 0x9000, scoped, tag = 'internal scratch']
  %s0 = inlined_call_operand.vmem [shape: f32[2,4,256], index: 0, kind: input, shape index: {}]
  %s1 = inlined_call_operand.vmem [shape: f32[4,4], index: 1, kind: input, shape index: {}]
  %s2 = inlined_call_operand.vmem [shape: f32[4,1], index: 2, kind: input, shape index: {}]
  %s3 = inlined_call_operand.vmem [shape: bf16[2,4,256], index: 3, kind: output, shape index: {}]
  %s4 = sld [smem:[#allocation0]]
  $region45: #{sample_forward.1} parent=0
    _
  %s6 = ssub.s32 1, %s4
  %s7 = scalar_select 0, %s6, %s4
  loop: start=0, step=1, limit=4
  $region2: #{sample_forward.1} parent=0 // loop_pre_header
    _
  $region3: #{sample_forward.1} parent=0 // loop_header
    %s9 = sphi 0, %s13
    %p10 = scmp.ge.s32.totalorder %s9, 4
    %s16 = sphi 0, %s28
    %s17 = sphi 0, %s24
    %s18 = sphi 0, %s16
    %s19 = sphi 0, %s17
    %s20 = sphi 0, %s18
    %s21 = sphi 0, %s19
    %s33 = sphi 0, %s35
    %s36 = sphi 0, %s33
    %s37 = sphi 0, %s36
    %s53 = sphi 0, %s37
    %s57 = sphi 0, %s57
    %s59 = sphi 0, %s57
    %s60 = sphi 0, %s59
    %s74 = sphi 0, %s60
    %s78 = sphi 0, %s78
    %s80 = sphi 0, %s78
    %s81 = sphi 0, %s80
    %s95 = sphi 0, %s81
    %s103 = sphi 0, %s105
    %s106 = sphi 0, %s103
    %s107 = sphi 0, %s106
    %s123 = sphi 0, %s107
  $region4: #{sample_forward.1} parent=0 // loop_header_branch
    %12 = sbr.rel (%p10) target = $region8
  $region5: #{sample_forward.1} parent=0 // loop_body
    %s14 = ssub.s32 %s9, 1
    %s15 = ssub.s32 %s9, 2
    %s22 = sadd.s32 1, %s17
    %p23 = scmp.ge.s32.totalorder %s22, 1
    %s24 = scalar_select %p23, 0, %s22
    %s25 = sadd.s32 1, %s16
    %s26 = scalar_select %p23, %s25, %s16
    %p27 = scmp.ge.s32.totalorder %s26, 2
    %s28 = scalar_select %p27, 0, %s26
    %s29 = ssub.s32 %s16, %s28
    %s30 = ssub.s32 %s17, %s24
    %s31 = sor.u32 %s29, %s30
    %p32 = scmp.eq.s32.totalorder %s31, 0
    %s34 = sadd.s32 %s33, 1
    %s35 = scalar_select %p32, %s33, %s34
    %p38 = pneg %p32
    %p39 = scmp.eq.s32.totalorder %s9, 1
    %p40 = por %p38, %p39
    %p41 = scmp.ne.s32.totalorder %s33, %s36
    %p42 = scmp.eq.s32.totalorder %s9, 0
    %p43 = por %p41, %p42
    %p44 = scmp.ne.s32.totalorder %s33, %s36
    %p45 = scmp.eq.s32.totalorder %s14, 1
    %p46 = por %p44, %p45
    %p47 = scmp.ne.s32.totalorder %s36, %s37
    %p48 = scmp.eq.s32.totalorder %s14, 0
    %p49 = por %p47, %p48
    %p50 = scmp.ne.s32.totalorder %s36, %s37
    %p51 = scmp.eq.s32.totalorder %s15, 1
    %p52 = por %p50, %p51
    %p54 = scmp.ne.s32.totalorder %s37, %s53
    %p55 = scmp.eq.s32.totalorder %s15, 0
    %p56 = por %p54, %p55
    %s58 = sadd.s32 %s57, 1
    %p61 = scmp.eq.s32.totalorder %s9, 1
    %p62 = scmp.ne.s32.totalorder %s57, %s59
    %p63 = scmp.eq.s32.totalorder %s9, 0
    %p64 = por %p62, %p63
    %p65 = scmp.ne.s32.totalorder %s57, %s59
    %p66 = scmp.eq.s32.totalorder %s14, 1
    %p67 = por %p65, %p66
    %p68 = scmp.ne.s32.totalorder %s59, %s60
    %p69 = scmp.eq.s32.totalorder %s14, 0
    %p70 = por %p68, %p69
    %p71 = scmp.ne.s32.totalorder %s59, %s60
    %p72 = scmp.eq.s32.totalorder %s15, 1
    %p73 = por %p71, %p72
    %p75 = scmp.ne.s32.totalorder %s60, %s74
    %p76 = scmp.eq.s32.totalorder %s15, 0
    %p77 = por %p75, %p76
    %s79 = sadd.s32 %s78, 1
    %p82 = scmp.eq.s32.totalorder %s9, 1
    %p83 = scmp.ne.s32.totalorder %s78, %s80
    %p84 = scmp.eq.s32.totalorder %s9, 0
    %p85 = por %p83, %p84
    %p86 = scmp.ne.s32.totalorder %s78, %s80
    %p87 = scmp.eq.s32.totalorder %s14, 1
    %p88 = por %p86, %p87
    %p89 = scmp.ne.s32.totalorder %s80, %s81
    %p90 = scmp.eq.s32.totalorder %s14, 0
    %p91 = por %p89, %p90
    %p92 = scmp.ne.s32.totalorder %s80, %s81
    %p93 = scmp.eq.s32.totalorder %s15, 1
    %p94 = por %p92, %p93
    %p96 = scmp.ne.s32.totalorder %s81, %s95
    %p97 = scmp.eq.s32.totalorder %s15, 0
    %p98 = por %p96, %p97
    %s99 = ssub.s32 %s16, %s28
    %s100 = ssub.s32 %s17, %s24
    %s101 = sor.u32 %s99, %s100
    %p102 = scmp.eq.s32.totalorder %s101, 0
    %s104 = sadd.s32 %s103, 1
    %s105 = scalar_select %p102, %s103, %s104
    %p108 = pneg %p102
    %p109 = scmp.eq.s32.totalorder %s9, 1
    %p110 = por %p108, %p109
    %p111 = scmp.ne.s32.totalorder %s103, %s106
    %p112 = scmp.eq.s32.totalorder %s9, 0
    %p113 = por %p111, %p112
    %p114 = scmp.ne.s32.totalorder %s103, %s106
    %p115 = scmp.eq.s32.totalorder %s14, 1
    %p116 = por %p114, %p115
    %p117 = scmp.ne.s32.totalorder %s106, %s107
    %p118 = scmp.eq.s32.totalorder %s14, 0
    %p119 = por %p117, %p118
    %p120 = scmp.ne.s32.totalorder %s106, %s107
    %p121 = scmp.eq.s32.totalorder %s15, 1
    %p122 = por %p120, %p121
    %p124 = scmp.ne.s32.totalorder %s107, %s123
    %p125 = scmp.eq.s32.totalorder %s15, 0
    %p126 = por %p124, %p125
    %p127 = scmp.le.s32.totalorder 1, %s9
    %p128 = scmp.lt.s32.totalorder %s9, 3
    %p129 = pnand %p127, %p128
    %p130 = pneg %p129
    // Predicated region
    $region9: #{sample_forward.1} parent=5 // pred_check
      _
    $region10: #{sample_forward.1} parent=5 // pred_check_branch
      %132 = sbr.rel (%p129) target = $region12
    $region11: #{sample_forward.1} parent=5 // pred_region
      %s133 = ssub.s32 %s9, 1
      // Predicated region
      $region13: #{sample_forward.1} parent=11 // pred_check
        %p134 = pneg %p70
      $region14: #{sample_forward.1} parent=11 // pred_check_branch
        %136 = sbr.rel (%p134) target = $region16
      $region15: #{sample_forward.1} parent=11 // pred_region
        _
      $region16: #{sample_forward.1} parent=11 // pred_fallthru
        _
      // Predicated region
      $region17: #{sample_forward.1} parent=11 // pred_check
        %p137 = pneg %p91
      $region18: #{sample_forward.1} parent=11 // pred_check_branch
        %139 = sbr.rel (%p137) target = $region20
      $region19: #{sample_forward.1} parent=11 // pred_region
        _
      $region20: #{sample_forward.1} parent=11 // pred_fallthru
        _
    $region12: #{sample_forward.1} parent=5 // pred_fallthru
      _
    %p140 = scmp.lt.s32.totalorder %s9, 2
    // Predicated region
    $region21: #{sample_forward.1} parent=5 // pred_check
      %p141 = pneg %p140
    $region22: #{sample_forward.1} parent=5 // pred_check_branch
      %143 = sbr.rel (%p141) target = $region24
    $region23: #{sample_forward.1} parent=5 // pred_region
      // Predicated region
      $region25: #{sample_forward.1} parent=23 // pred_check
        %p144 = pneg %p43
      $region26: #{sample_forward.1} parent=23 // pred_check_branch
        %146 = sbr.rel (%p144) target = $region28
      $region27: #{sample_forward.1} parent=23 // pred_region
        %s147 = smul.u32 2, %s17
        %p148 = scmp.lt.s32.totalorder %s16, 1
        %s149 = scalar_select %p148, %s16, 1
        %p150 = scmp.lt.s32.totalorder %s147, 1
        %s151 = scalar_select %p150, %s147, 1
        %s152 = smul.addr %s149, 2
        %s153 = sadd.s32 %s151, %s152
        %s154 = smul.addr %s153, 4
        %s155 = scalar_lea.vmem %s0, %s154
        %s156 = smul.u32 2, %s17
      $region28: #{sample_forward.1} parent=23 // pred_fallthru
        _
    $region24: #{sample_forward.1} parent=5 // pred_fallthru
      _
    %p157 = scmp.le.s32.totalorder 1, %s9
    %p158 = scmp.lt.s32.totalorder %s9, 3
    %p159 = pnand %p157, %p158
    %p160 = pneg %p159
    // Predicated region
    $region29: #{sample_forward.1} parent=5 // pred_check
      _
    $region30: #{sample_forward.1} parent=5 // pred_check_branch
      %162 = sbr.rel (%p159) target = $region32
    $region31: #{sample_forward.1} parent=5 // pred_region
      %s163 = ssub.s32 %s9, 1
      %s164 = smul.u32 2, %s19
      %p165 = scmp.lt.s32.totalorder %s18, 1
      %s166 = scalar_select %p165, %s18, 1
      %p167 = scmp.lt.s32.totalorder %s164, 1
      %s168 = scalar_select %p167, %s164, 1
      %s169 = smul.addr %s166, 2
      %s170 = sadd.s32 %s168, %s169
      %s171 = smul.addr %s170, 4
      %s172 = scalar_lea.vmem %s0, %s171
      %p173 = pneg %p49
      %p174 = pneg %p46
      %p175 = pneg %p70
      %p176 = pneg %p67
      %p177 = pneg %p91
      %p178 = pneg %p88
      %p179 = pneg %p119
      %p180 = pneg %p116
      %s181 = smul.u32 2, %s19
      %p182 = scmp.lt.s32.totalorder %s18, 1
      %s183 = scalar_select %p182, %s18, 1
      %p184 = scmp.lt.s32.totalorder %s181, 1
      %s185 = scalar_select %p184, %s181, 1
      %s186 = smul.addr %s183, 2
      %s187 = sadd.s32 %s185, %s186
      %s188 = smul.addr %s187, 2
      %s189 = scalar_lea.vmem %s3, %s188
      %s190 = smul.u32 2, %s19
      %p191 = scmp.lt.s32.totalorder %s18, 1
      %s192 = scalar_select %p191, %s18, 1
      %p193 = scmp.lt.s32.totalorder %s190, 1
      %s194 = scalar_select %p193, %s190, 1
      %s195 = smul.addr %s192, 2
      %s196 = sadd.s32 %s194, %s195
      %s197 = smul.addr %s196, 4
      %s198 = scalar_lea.vmem %s0, %s197
      %s199 = smul.u32 2, %s19
      %s200 = smul.u32 2, %s19
      %p201 = scmp.lt.s32.totalorder %s18, 1
      %s202 = scalar_select %p201, %s18, 1
      %p203 = scmp.lt.s32.totalorder %s200, 1
      %s204 = scalar_select %p203, %s200, 1
      %s205 = smul.addr %s202, 2
      %s206 = sadd.s32 %s204, %s205
      %s207 = smul.addr %s206, 2
      %s208 = scalar_lea.vmem %s3, %s207
      %s209 = smul.u32 2, %s19
      %v210 = vld [vmem:[%s198] sm:$0xff]
      %v211 = vld [vmem:[%s1] sm:$0xf]
      %v212 = vld [vmem:[%s2] sm:$0xf]
      %214 = vset.pattern.permute.xlu0 0
      %215 = vperm.xlu0 %214, %v212
      %v216 = vpop.permute.xlu0 %215
      %219 = vst [vmem:[#allocation1] ss:$2 sm:$0xff] %v210
      %v220 = vld.sshfl [vmem:[#allocation1] sm:$0xff pattern:$0x75316420]
      %v221 = vld.sshfl [vmem:[#allocation1 + $0x8] sm:$0xff pattern:$0x75316420]
      %vm222 = vcmask 31744
      %v224 = vsel %vm222, %v211, 0
      %vm226 = vcmask 1043456
      %v227 = vsel %vm226, %v220, 0
      %v229 = vsel %vm226, %v221, 0
      %231 = vmatpush.msra.mxu0 0.0
      %232 = vmatpush.msra.mxu0 0.0
      %233 = vmatpush.msra.mxu0 0.0
      %234 = vmatpush.msra.mxu0 0.0
      %235 = vmatpush.msra.mxu0 0.0
      %236 = vmatpush.msra.mxu0 0.0
      %237 = vmatpush.msra.mxu0 0.0
      %238 = vmatpush.msra.mxu0 0.0
      %239 = vmatpush.msra.mxu0 0.0
      %240 = vmatpush.msra.mxu0 0.0
      %241 = vmatpush.msra.mxu0 0.0
      %242 = vmatpush.msra.mxu0 0.0
      %243 = vmatpush.msra.mxu0 0.0
      %244 = vmatpush.msra.mxu0 0.0
      %245 = vmatpush.msra.mxu0 0.0
      %246 = vmatpush.msra.mxu0 %v227
      %247 = vmatmul.f32.gmra.mxu0 %v224
      %v248 = vpop.f32.mrf.mxu0
      %v249 = vadd.f32 %v216, %v248
      %250 = vdwg.mxu0
      %251 = vmatpush.msra.mxu0 0.0
      %252 = vmatpush.msra.mxu0 0.0
      %253 = vmatpush.msra.mxu0 0.0
      %254 = vmatpush.msra.mxu0 0.0
      %255 = vmatpush.msra.mxu0 0.0
      %256 = vmatpush.msra.mxu0 0.0
      %257 = vmatpush.msra.mxu0 0.0
      %258 = vmatpush.msra.mxu0 0.0
      %259 = vmatpush.msra.mxu0 0.0
      %260 = vmatpush.msra.mxu0 0.0
      %261 = vmatpush.msra.mxu0 0.0
      %262 = vmatpush.msra.mxu0 0.0
      %263 = vmatpush.msra.mxu0 0.0
      %264 = vmatpush.msra.mxu0 0.0
      %265 = vmatpush.msra.mxu0 0.0
      %266 = vmatpush.msra.mxu0 %v229
      %267 = vmatmul.f32.gmra.mxu0 %v224
      %v268 = vpop.f32.mrf.mxu0
      %v269 = vadd.f32 %v216, %v268
      %270 = vdwg.mxu0
      %v271 = vmax.f32 %v249, 0.0
      %v272 = vmax.f32 %v269, 0.0
      %v273 = vpack.c.bf16 %v272, %v271
      %v275 = vrot.slane %v273, 2
      %vm276 = vcmask 1041408
      %v279 = vsel %vm276, %v273, %v275
      %281 = vst [vmem:[%s208] sm:$0xf] %v279
      %s282 = smul.u32 2, %s19
      %p283 = scmp.lt.s32.totalorder %s18, 1
      %s284 = scalar_select %p283, %s18, 1
      %p285 = scmp.lt.s32.totalorder %s282, 1
      %s286 = scalar_select %p285, %s282, 1
      %s287 = smul.addr %s284, 2
      %s288 = sadd.s32 %s286, %s287
      %s289 = smul.addr %s288, 2
      %s290 = scalar_lea.vmem %s3, %s289
      // Predicated region
      $region33: #{sample_forward.1} parent=31 // pred_check
        %p291 = pneg %p116
      $region34: #{sample_forward.1} parent=31 // pred_check_branch
        %293 = sbr.rel (%p291) target = $region36
      $region35: #{sample_forward.1} parent=31 // pred_region
        %s294 = smul.u32 2, %s19
      $region36: #{sample_forward.1} parent=31 // pred_fallthru
        _
    $region32: #{sample_forward.1} parent=5 // pred_fallthru
      _
    %p295 = scmp.le.s32.totalorder 2, %s9
    // Predicated region
    $region37: #{sample_forward.1} parent=5 // pred_check
      %p296 = pneg %p295
    $region38: #{sample_forward.1} parent=5 // pred_check_branch
      %298 = sbr.rel (%p296) target = $region40
    $region39: #{sample_forward.1} parent=5 // pred_region
      %s299 = ssub.s32 %s9, 2
      // Predicated region
      $region41: #{sample_forward.1} parent=39 // pred_check
        %p300 = pneg %p122
      $region42: #{sample_forward.1} parent=39 // pred_check_branch
        %302 = sbr.rel (%p300) target = $region44
      $region43: #{sample_forward.1} parent=39 // pred_region
        %s303 = smul.u32 2, %s21
        %p304 = scmp.lt.s32.totalorder %s20, 1
        %s305 = scalar_select %p304, %s20, 1
        %p306 = scmp.lt.s32.totalorder %s303, 1
        %s307 = scalar_select %p306, %s303, 1
        %s308 = smul.addr %s305, 2
        %s309 = sadd.s32 %s307, %s308
        %s310 = smul.addr %s309, 2
        %s311 = scalar_lea.vmem %s3, %s310
      $region44: #{sample_forward.1} parent=39 // pred_fallthru
        _
    $region40: #{sample_forward.1} parent=5 // pred_fallthru
      _
  $region6: #{sample_forward.1} parent=0 // loop_footer
    %s13 = sadd.s32 1, %s9
  $region7: #{sample_forward.1} parent=0 // loop_footer_branch
    %8 = sbr.rel target = $region3
  $region8: #{sample_forward.1} parent=0 // loop_exit
    _

</llo_original>
